<compile_context>
chip_gen: v7x
topology: tpu7x:2x2x1
jax: 0.10.0
libtpu: 0.0.40
codegen_flags: <defaults>
</compile_context>

<pallas_src>
import math

import jax
import jax.numpy as jnp
import numpy as np
from jax import lax
from jax.experimental import pallas as pl
from jax.experimental.pallas import tpu as pltpu

LN_EPS = 1e-5  # PyTorch nn.LayerNorm default


def _layer_norm(x, g, b):
    """Row-wise LayerNorm over the last axis (stats in f32); g/b broadcast."""
    x = x.astype(jnp.float32)
    mu = jnp.mean(x, axis=-1, keepdims=True)
    xc = x - mu
    var = jnp.mean(xc * xc, axis=-1, keepdims=True)
    return xc * lax.rsqrt(var + LN_EPS) * g + b


def prev_embedding_pallas(common_voc, ocr, prev_ids, pos_type_ln,
                          cv_g, cv_b, d_g, d_b, *, seq_block=None):
    """Pallas kernel call.

    Shapes: common_voc (V,H), ocr (B,O,H), prev_ids (B,S) int32,
            pos_type_ln (S,H) f32  = LayerNorm(pos_emb + type_emb) precomputed,
            cv_g/cv_b (1,H)  common-vocab LN params,
            d_g/d_b  (1,H)  = (ocr LN params) - (common-vocab LN params).
    """
    B, O, H = ocr.shape
    V = common_voc.shape[0]
    S = prev_ids.shape[1]
    out_dtype = common_voc.dtype

    ST = S if seq_block is None else seq_block
    assert S % ST == 0, "seq_block must divide S"
    n_s = S // ST

    prev_ids = prev_ids.astype(jnp.int32)
    ids_vec = prev_ids[..., None]                      # (B, S, 1) for vector mask

    def kernel(ids_ref,                                # (B,S) int32, SMEM prefetch
               cv_ref, ocr_ref,                        # VMEM (V,H), (O,H) raw tables
               idv_ref, pt_ref,                        # VMEM (ST,1) i32, (ST,H) f32
               cvg_ref, cvb_ref, dg_ref, db_ref,       # VMEM (1,H) each
               out_ref,                                # VMEM (ST,H)
               rows_ref):                              # scratch VMEM (ST,H) f32
        b = pl.program_id(0)
        base = pl.multiple_of(pl.program_id(1) * ST, ST)

        # ---- Gather: in-VMEM dynamic row slices (no per-row HBM DMA) --------
        def gather(s, carry):
            idx = ids_ref[b, base + s]
            is_ocr = idx >= V
            cv_idx = jnp.clip(idx, 0, V - 1)           # clamp: never read OOB
            ocr_idx = jnp.clip(idx - V, 0, O - 1)
            row = jnp.where(is_ocr,
                            ocr_ref[pl.ds(ocr_idx, 1), :],
                            cv_ref[pl.ds(cv_idx, 1), :]).astype(jnp.float32)
            rows_ref[pl.ds(s, 1), :] = row
            return carry

        # Capped unroll: the scalar/load slots only retire ~1 row per cycle.
        lax.fori_loop(0, ST, gather, 0, unroll=min(8, ST))

        # ---- LayerNorm only the gathered rows (LN commutes with row gather) --
        # Delta-form per-row params: g = cv_g + m*(ocr_g - cv_g)  (VALU-lean).
        m = (idv_ref[...] >= V).astype(jnp.float32)    # (ST,1): 1.0 -> OCR row
        g = cvg_ref[...] + m * dg_ref[...]             # (ST,H) per-row gamma
        bt = cvb_ref[...] + m * db_ref[...]            # (ST,H) per-row beta
        rows_ln = _layer_norm(rows_ref[...], g, bt)    # (ST,H) f32

        # pos/type LN was precomputed in the wrapper; single dense store.
        out_ref[...] = (rows_ln + pt_ref[...]).astype(out_ref.dtype)

    vec_spec = pl.BlockSpec((1, H), lambda b, sb, ids: (0, 0))

    # Explicit VMEM budget (v7x has only 64 MiB physical); generous headroom.
    itemsize = jnp.dtype(out_dtype).itemsize
    vmem_need = (2 * V * H * itemsize          # common-vocab table (resident)
                 + 2 * O * H * itemsize        # ocr[b], double-buffered
                 + 2 * ST * 4                  # ids block
                 + 2 * ST * H * 4              # pos/type LN (f32)
                 + 2 * ST * H * itemsize       # output, double-buffered
                 + ST * H * 4                  # gathered-rows scratch
                 + 8 * H * 4)                  # LN parameter vectors
    vmem_limit = int(min(max(2 * vmem_need, 16 * 2**20), 64 * 2**20))

    return pl.pallas_call(
        kernel,
        out_shape=jax.ShapeDtypeStruct((B, S, H), out_dtype),
        grid_spec=pltpu.PrefetchScalarGridSpec(
            num_scalar_prefetch=1,              # prev_ids -> SMEM, drives gather
            grid=(B, n_s),
            in_specs=[
                pl.BlockSpec((V, H), lambda b, sb, ids: (0, 0)),           # common_voc (resident)
                pl.BlockSpec((None, O, H), lambda b, sb, ids: (b, 0, 0)),  # ocr[b]
                pl.BlockSpec((None, ST, 1), lambda b, sb, ids: (b, sb, 0)),  # ids (vector mask)
                pl.BlockSpec((ST, H), lambda b, sb, ids: (sb, 0)),         # pos/type LN (resident)
                vec_spec, vec_spec,                                        # cv LN gamma/beta
                vec_spec, vec_spec,                                        # (ocr-cv) LN deltas
            ],
            out_specs=pl.BlockSpec((None, ST, H), lambda b, sb, ids: (b, sb, 0)),
            scratch_shapes=[pltpu.VMEM((ST, H), jnp.float32)],
        ),
        compiler_params=pltpu.CompilerParams(
            dimension_semantics=("parallel", "parallel"),  # both axes independent
            vmem_limit_bytes=vmem_limit),
    )(prev_ids, common_voc, ocr, ids_vec, pos_type_ln,
      cv_g, cv_b, d_g, d_b)


def prev_embedding_forward(common_voc, ocr, prev_ids, params, *, seq_block=None):
    """Glue: static positional/type lookups + hoisted pos/type LN, then the kernel."""
    B, S = prev_ids.shape
    V = common_voc.shape[0]
    prev_ids = prev_ids.astype(jnp.int32)
    pos_ids = jnp.arange(S, dtype=jnp.int32)
    pos_emb = params["pos_table"][pos_ids]                 # (S, H)
    type_ids = (pos_ids >= V).astype(jnp.int32)            # exact reference semantics
    type_emb = params["type_table"][type_ids]              # (S, H)
    # Batch-invariant -> LayerNorm once here instead of per grid step in-kernel.
    pos_type_ln = _layer_norm(pos_emb + type_emb,
                              params["emb_g"], params["emb_b"])   # (S, H) f32
    d_g = params["ocr_g"] - params["cv_g"]
    d_b = params["ocr_b"] - params["cv_b"]
    return prev_embedding_pallas(
        common_voc, ocr, prev_ids, pos_type_ln,
        params["cv_g"], params["cv_b"], d_g, d_b, seq_block=seq_block)


def prev_embedding_reference(common_voc, ocr, prev_ids, params):
    """Pure-JAX reference implementing the same semantics (table LN then gather)."""
    B, S = prev_ids.shape
    V = common_voc.shape[0]
    cvn = _layer_norm(common_voc, params["cv_g"], params["cv_b"])
    ocrn = _layer_norm(ocr, params["ocr_g"], params["ocr_b"])
    table = jnp.concatenate(
        [jnp.broadcast_to(cvn[None], (B,) + cvn.shape), ocrn], axis=1)
    last = jnp.take_along_axis(table, prev_ids[:, :, None].astype(jnp.int32),
                               axis=1)
    pos_ids = jnp.arange(S, dtype=jnp.int32)
    pos_emb = params["pos_table"][pos_ids]
    type_emb = params["type_table"][(pos_ids >= V).astype(jnp.int32)]
    pt = _layer_norm(pos_emb + type_emb, params["emb_g"], params["emb_b"])
    return (last + pt[None]).astype(common_voc.dtype)


if __name__ == "__main__":
    B, S, H = 2, 8, 32       # batch, seq, hidden
    V, O = 16, 8             # common vocab rows, num_ocr
    DEC_LENGTH = 16          # max_length

    key = jax.random.PRNGKey(0)
    ks = jax.random.split(key, 8)

    common_voc = jax.random.normal(ks[0], (V, H), jnp.float32)
    ocr = jax.random.normal(ks[1], (B, O, H), jnp.float32)
    prev_ids = jax.random.randint(ks[2], (B, S), 0, V + O, jnp.int32)

    # positional_embedding weight via init_pe_weights (sinusoidal).
    position = jnp.arange(DEC_LENGTH, dtype=jnp.float32)[:, None]
    div_term = jnp.exp(jnp.arange(0, H, 2, dtype=jnp.float32)
                       * (-math.log(10000.0) / H))
    pe = jnp.zeros((DEC_LENGTH, H), jnp.float32)
    pe = pe.at[:, 0::2].set(jnp.sin(position * div_term))
    pe = pe.at[:, 1::2].set(jnp.cos(position * div_term))

    # token_type_embedding weight (TYPE_NUM=2).
    type_table = 0.02 * jax.random.normal(ks[3], (2, H), jnp.float32)

    def ln_params(k):
        k1, k2 = jax.random.split(k)
        g = 1.0 + 0.1 * jax.random.normal(k1, (1, H), jnp.float32)
        b = 0.1 * jax.random.normal(k2, (1, H), jnp.float32)
        return g, b

    cv_g, cv_b = ln_params(ks[4])
    ocr_g, ocr_b = ln_params(ks[5])
    emb_g, emb_b = ln_params(ks[6])

    params = dict(pos_table=pe, type_table=type_table,
                  cv_g=cv_g, cv_b=cv_b, ocr_g=ocr_g, ocr_b=ocr_b,
                  emb_g=emb_g, emb_b=emb_b)

    out = prev_embedding_forward(common_voc, ocr, prev_ids, params)
    out = jax.block_until_ready(out)

    ref = prev_embedding_reference(common_voc, ocr, prev_ids, params)
    np.testing.assert_allclose(np.asarray(out), np.asarray(ref),
                               rtol=1e-5, atol=1e-5)
    assert out.shape == (B, S, H)
    print("KERNEL_OK")
</pallas_src>

<mosaic_0001>
module attributes {stable_mosaic.version = 11 : i64} {
  func.func @kernel(%arg0: i32, %arg1: i32, %arg2: memref<2x8xi32, #tpu.memory_space<smem>>, %arg3: memref<16x32xf32, #tpu.memory_space<vmem>>, %arg4: memref<1x8x32xf32, #tpu.memory_space<vmem>>, %arg5: memref<1x8x1xi32, #tpu.memory_space<vmem>>, %arg6: memref<8x32xf32, #tpu.memory_space<vmem>>, %arg7: memref<1x32xf32, #tpu.memory_space<vmem>>, %arg8: memref<1x32xf32, #tpu.memory_space<vmem>>, %arg9: memref<1x32xf32, #tpu.memory_space<vmem>>, %arg10: memref<1x32xf32, #tpu.memory_space<vmem>>, %arg11: memref<1x8x32xf32, #tpu.memory_space<vmem>>, %arg12: memref<8x32xf32, #tpu.memory_space<vmem>>) attributes {dimension_semantics = [#tpu.dimension_semantics<parallel>, #tpu.dimension_semantics<parallel>], iteration_bounds = array<i64: 2, 1>, scalar_prefetch = 1 : i64, scratch_operands = 1 : i64, tpu.core_type = #tpu.core_type<tc>, window_params = [{pipeline_mode = #tpu.pipeline_mode<synchronous>, transform_indices = @transform_0, window_bounds = array<i64: 16, 32>}, {transform_indices = @transform_1, window_bounds = array<i64: 1, 8, 32>}, {transform_indices = @transform_2, window_bounds = array<i64: 1, 8, 1>}, {transform_indices = @transform_3, window_bounds = array<i64: 8, 32>}, {pipeline_mode = #tpu.pipeline_mode<synchronous>, transform_indices = @transform_4, window_bounds = array<i64: 1, 32>}, {pipeline_mode = #tpu.pipeline_mode<synchronous>, transform_indices = @transform_5, window_bounds = array<i64: 1, 32>}, {pipeline_mode = #tpu.pipeline_mode<synchronous>, transform_indices = @transform_6, window_bounds = array<i64: 1, 32>}, {pipeline_mode = #tpu.pipeline_mode<synchronous>, transform_indices = @transform_7, window_bounds = array<i64: 1, 32>}, {transform_indices = @transform_8, window_bounds = array<i64: 1, 8, 32>}]} {
    %c8_i32 = arith.constant 8 : i32
    %0 = arith.muli %arg1, %c8_i32 : i32
    %1 = tpu.assume_multiple %0, 8 : i32
    %c0_i32 = arith.constant 0 : i32
    %2 = arith.addi %1, %c0_i32 : i32
    %3 = arith.index_cast %arg0 : i32 to index
    %4 = arith.index_cast %2 : i32 to index
    %5 = memref.load %arg2[%3, %4] : memref<2x8xi32, #tpu.memory_space<smem>>
    %c16_i32 = arith.constant 16 : i32
    %6 = arith.cmpi sge, %5, %c16_i32 : i32
    %c0_i32_0 = arith.constant 0 : i32
    %c15_i32 = arith.constant 15 : i32
    %7 = arith.maxsi %c0_i32_0, %5 : i32
    %8 = arith.minsi %c15_i32, %7 : i32
    %c16_i32_1 = arith.constant 16 : i32
    %9 = arith.subi %5, %c16_i32_1 : i32
    %c0_i32_2 = arith.constant 0 : i32
    %c7_i32 = arith.constant 7 : i32
    %10 = arith.maxsi %c0_i32_2, %9 : i32
    %11 = arith.minsi %c7_i32, %10 : i32
    %c0 = arith.constant 0 : index
    %12 = arith.index_cast %11 : i32 to index
    %c0_3 = arith.constant 0 : index
    %13 = vector.load %arg4[%c0, %12, %c0_3] : memref<1x8x32xf32, #tpu.memory_space<vmem>>, vector<1x1x32xf32>
    %14 = vector.shape_cast %13 : vector<1x1x32xf32> to vector<1x32xf32>
    %15 = arith.index_cast %8 : i32 to index
    %c0_4 = arith.constant 0 : index
    %16 = vector.load %arg3[%15, %c0_4] : memref<16x32xf32, #tpu.memory_space<vmem>>, vector<1x32xf32>
    %17 = arith.select %6, %14, %16 : vector<1x32xf32>
    %18 = arith.index_cast %c0_i32 : i32 to index
    %c0_5 = arith.constant 0 : index
    %19 = vector.load %arg12[%18, %c0_5] : memref<8x32xf32, #tpu.memory_space<vmem>>, vector<1x32xf32>
    tpu.vector_store %arg12[%18, %c0_5], %17 {strides = array<i32>} : memref<8x32xf32, #tpu.memory_space<vmem>>, vector<1x32xf32>,
    %c1_i32 = arith.constant 1 : i32
    %20 = arith.addi %1, %c1_i32 : i32
    %21 = arith.index_cast %arg0 : i32 to index
    %22 = arith.index_cast %20 : i32 to index
    %23 = memref.load %arg2[%21, %22] : memref<2x8xi32, #tpu.memory_space<smem>>
    %c16_i32_6 = arith.constant 16 : i32
    %24 = arith.cmpi sge, %23, %c16_i32_6 : i32
    %c0_i32_7 = arith.constant 0 : i32
    %c15_i32_8 = arith.constant 15 : i32
    %25 = arith.maxsi %c0_i32_7, %23 : i32
    %26 = arith.minsi %c15_i32_8, %25 : i32
    %c16_i32_9 = arith.constant 16 : i32
    %27 = arith.subi %23, %c16_i32_9 : i32
    %c0_i32_10 = arith.constant 0 : i32
    %c7_i32_11 = arith.constant 7 : i32
    %28 = arith.maxsi %c0_i32_10, %27 : i32
    %29 = arith.minsi %c7_i32_11, %28 : i32
    %c0_12 = arith.constant 0 : index
    %30 = arith.index_cast %29 : i32 to index
    %c0_13 = arith.constant 0 : index
    %31 = vector.load %arg4[%c0_12, %30, %c0_13] : memref<1x8x32xf32, #tpu.memory_space<vmem>>, vector<1x1x32xf32>
    %32 = vector.shape_cast %31 : vector<1x1x32xf32> to vector<1x32xf32>
    %33 = arith.index_cast %26 : i32 to index
    %c0_14 = arith.constant 0 : index
    %34 = vector.load %arg3[%33, %c0_14] : memref<16x32xf32, #tpu.memory_space<vmem>>, vector<1x32xf32>
    %35 = arith.select %24, %32, %34 : vector<1x32xf32>
    %36 = arith.index_cast %c1_i32 : i32 to index
    %c0_15 = arith.constant 0 : index
    %37 = vector.load %arg12[%36, %c0_15] : memref<8x32xf32, #tpu.memory_space<vmem>>, vector<1x32xf32>
    tpu.vector_store %arg12[%36, %c0_15], %35 {strides = array<i32>} : memref<8x32xf32, #tpu.memory_space<vmem>>, vector<1x32xf32>,
    %c2_i32 = arith.constant 2 : i32
    %38 = arith.addi %1, %c2_i32 : i32
    %39 = arith.index_cast %arg0 : i32 to index
    %40 = arith.index_cast %38 : i32 to index
    %41 = memref.load %arg2[%39, %40] : memref<2x8xi32, #tpu.memory_space<smem>>
    %c16_i32_16 = arith.constant 16 : i32
    %42 = arith.cmpi sge, %41, %c16_i32_16 : i32
    %c0_i32_17 = arith.constant 0 : i32
    %c15_i32_18 = arith.constant 15 : i32
    %43 = arith.maxsi %c0_i32_17, %41 : i32
    %44 = arith.minsi %c15_i32_18, %43 : i32
    %c16_i32_19 = arith.constant 16 : i32
    %45 = arith.subi %41, %c16_i32_19 : i32
    %c0_i32_20 = arith.constant 0 : i32
    %c7_i32_21 = arith.constant 7 : i32
    %46 = arith.maxsi %c0_i32_20, %45 : i32
    %47 = arith.minsi %c7_i32_21, %46 : i32
    %c0_22 = arith.constant 0 : index
    %48 = arith.index_cast %47 : i32 to index
    %c0_23 = arith.constant 0 : index
    %49 = vector.load %arg4[%c0_22, %48, %c0_23] : memref<1x8x32xf32, #tpu.memory_space<vmem>>, vector<1x1x32xf32>
    %50 = vector.shape_cast %49 : vector<1x1x32xf32> to vector<1x32xf32>
    %51 = arith.index_cast %44 : i32 to index
    %c0_24 = arith.constant 0 : index
    %52 = vector.load %arg3[%51, %c0_24] : memref<16x32xf32, #tpu.memory_space<vmem>>, vector<1x32xf32>
    %53 = arith.select %42, %50, %52 : vector<1x32xf32>
    %54 = arith.index_cast %c2_i32 : i32 to index
    %c0_25 = arith.constant 0 : index
    %55 = vector.load %arg12[%54, %c0_25] : memref<8x32xf32, #tpu.memory_space<vmem>>, vector<1x32xf32>
    tpu.vector_store %arg12[%54, %c0_25], %53 {strides = array<i32>} : memref<8x32xf32, #tpu.memory_space<vmem>>, vector<1x32xf32>,
    %c3_i32 = arith.constant 3 : i32
    %56 = arith.addi %1, %c3_i32 : i32
    %57 = arith.index_cast %arg0 : i32 to index
    %58 = arith.index_cast %56 : i32 to index
    %59 = memref.load %arg2[%57, %58] : memref<2x8xi32, #tpu.memory_space<smem>>
    %c16_i32_26 = arith.constant 16 : i32
    %60 = arith.cmpi sge, %59, %c16_i32_26 : i32
    %c0_i32_27 = arith.constant 0 : i32
    %c15_i32_28 = arith.constant 15 : i32
    %61 = arith.maxsi %c0_i32_27, %59 : i32
    %62 = arith.minsi %c15_i32_28, %61 : i32
    %c16_i32_29 = arith.constant 16 : i32
    %63 = arith.subi %59, %c16_i32_29 : i32
    %c0_i32_30 = arith.constant 0 : i32
    %c7_i32_31 = arith.constant 7 : i32
    %64 = arith.maxsi %c0_i32_30, %63 : i32
    %65 = arith.minsi %c7_i32_31, %64 : i32
    %c0_32 = arith.constant 0 : index
    %66 = arith.index_cast %65 : i32 to index
    %c0_33 = arith.constant 0 : index
    %67 = vector.load %arg4[%c0_32, %66, %c0_33] : memref<1x8x32xf32, #tpu.memory_space<vmem>>, vector<1x1x32xf32>
    %68 = vector.shape_cast %67 : vector<1x1x32xf32> to vector<1x32xf32>
    %69 = arith.index_cast %62 : i32 to index
    %c0_34 = arith.constant 0 : index
    %70 = vector.load %arg3[%69, %c0_34] : memref<16x32xf32, #tpu.memory_space<vmem>>, vector<1x32xf32>
    %71 = arith.select %60, %68, %70 : vector<1x32xf32>
    %72 = arith.index_cast %c3_i32 : i32 to index
    %c0_35 = arith.constant 0 : index
    %73 = vector.load %arg12[%72, %c0_35] : memref<8x32xf32, #tpu.memory_space<vmem>>, vector<1x32xf32>
    tpu.vector_store %arg12[%72, %c0_35], %71 {strides = array<i32>} : memref<8x32xf32, #tpu.memory_space<vmem>>, vector<1x32xf32>,
    %c4_i32 = arith.constant 4 : i32
    %74 = arith.addi %1, %c4_i32 : i32
    %75 = arith.index_cast %arg0 : i32 to index
    %76 = arith.index_cast %74 : i32 to index
    %77 = memref.load %arg2[%75, %76] : memref<2x8xi32, #tpu.memory_space<smem>>
    %c16_i32_36 = arith.constant 16 : i32
    %78 = arith.cmpi sge, %77, %c16_i32_36 : i32
    %c0_i32_37 = arith.constant 0 : i32
    %c15_i32_38 = arith.constant 15 : i32
    %79 = arith.maxsi %c0_i32_37, %77 : i32
    %80 = arith.minsi %c15_i32_38, %79 : i32
    %c16_i32_39 = arith.constant 16 : i32
    %81 = arith.subi %77, %c16_i32_39 : i32
    %c0_i32_40 = arith.constant 0 : i32
    %c7_i32_41 = arith.constant 7 : i32
    %82 = arith.maxsi %c0_i32_40, %81 : i32
    %83 = arith.minsi %c7_i32_41, %82 : i32
    %c0_42 = arith.constant 0 : index
    %84 = arith.index_cast %83 : i32 to index
    %c0_43 = arith.constant 0 : index
    %85 = vector.load %arg4[%c0_42, %84, %c0_43] : memref<1x8x32xf32, #tpu.memory_space<vmem>>, vector<1x1x32xf32>
    %86 = vector.shape_cast %85 : vector<1x1x32xf32> to vector<1x32xf32>
    %87 = arith.index_cast %80 : i32 to index
    %c0_44 = arith.constant 0 : index
    %88 = vector.load %arg3[%87, %c0_44] : memref<16x32xf32, #tpu.memory_space<vmem>>, vector<1x32xf32>
    %89 = arith.select %78, %86, %88 : vector<1x32xf32>
    %90 = arith.index_cast %c4_i32 : i32 to index
    %c0_45 = arith.constant 0 : index
    %91 = vector.load %arg12[%90, %c0_45] : memref<8x32xf32, #tpu.memory_space<vmem>>, vector<1x32xf32>
    tpu.vector_store %arg12[%90, %c0_45], %89 {strides = array<i32>} : memref<8x32xf32, #tpu.memory_space<vmem>>, vector<1x32xf32>,
    %c5_i32 = arith.constant 5 : i32
    %92 = arith.addi %1, %c5_i32 : i32
    %93 = arith.index_cast %arg0 : i32 to index
    %94 = arith.index_cast %92 : i32 to index
    %95 = memref.load %arg2[%93, %94] : memref<2x8xi32, #tpu.memory_space<smem>>
    %c16_i32_46 = arith.constant 16 : i32
    %96 = arith.cmpi sge, %95, %c16_i32_46 : i32
    %c0_i32_47 = arith.constant 0 : i32
    %c15_i32_48 = arith.constant 15 : i32
    %97 = arith.maxsi %c0_i32_47, %95 : i32
    %98 = arith.minsi %c15_i32_48, %97 : i32
    %c16_i32_49 = arith.constant 16 : i32
    %99 = arith.subi %95, %c16_i32_49 : i32
    %c0_i32_50 = arith.constant 0 : i32
    %c7_i32_51 = arith.constant 7 : i32
    %100 = arith.maxsi %c0_i32_50, %99 : i32
    %101 = arith.minsi %c7_i32_51, %100 : i32
    %c0_52 = arith.constant 0 : index
    %102 = arith.index_cast %101 : i32 to index
    %c0_53 = arith.constant 0 : index
    %103 = vector.load %arg4[%c0_52, %102, %c0_53] : memref<1x8x32xf32, #tpu.memory_space<vmem>>, vector<1x1x32xf32>
    %104 = vector.shape_cast %103 : vector<1x1x32xf32> to vector<1x32xf32>
    %105 = arith.index_cast %98 : i32 to index
    %c0_54 = arith.constant 0 : index
    %106 = vector.load %arg3[%105, %c0_54] : memref<16x32xf32, #tpu.memory_space<vmem>>, vector<1x32xf32>
    %107 = arith.select %96, %104, %106 : vector<1x32xf32>
    %108 = arith.index_cast %c5_i32 : i32 to index
    %c0_55 = arith.constant 0 : index
    %109 = vector.load %arg12[%108, %c0_55] : memref<8x32xf32, #tpu.memory_space<vmem>>, vector<1x32xf32>
    tpu.vector_store %arg12[%108, %c0_55], %107 {strides = array<i32>} : memref<8x32xf32, #tpu.memory_space<vmem>>, vector<1x32xf32>,
    %c6_i32 = arith.constant 6 : i32
    %110 = arith.addi %1, %c6_i32 : i32
    %111 = arith.index_cast %arg0 : i32 to index
    %112 = arith.index_cast %110 : i32 to index
    %113 = memref.load %arg2[%111, %112] : memref<2x8xi32, #tpu.memory_space<smem>>
    %c16_i32_56 = arith.constant 16 : i32
    %114 = arith.cmpi sge, %113, %c16_i32_56 : i32
    %c0_i32_57 = arith.constant 0 : i32
    %c15_i32_58 = arith.constant 15 : i32
    %115 = arith.maxsi %c0_i32_57, %113 : i32
    %116 = arith.minsi %c15_i32_58, %115 : i32
    %c16_i32_59 = arith.constant 16 : i32
    %117 = arith.subi %113, %c16_i32_59 : i32
    %c0_i32_60 = arith.constant 0 : i32
    %c7_i32_61 = arith.constant 7 : i32
    %118 = arith.maxsi %c0_i32_60, %117 : i32
    %119 = arith.minsi %c7_i32_61, %118 : i32
    %c0_62 = arith.constant 0 : index
    %120 = arith.index_cast %119 : i32 to index
    %c0_63 = arith.constant 0 : index
    %121 = vector.load %arg4[%c0_62, %120, %c0_63] : memref<1x8x32xf32, #tpu.memory_space<vmem>>, vector<1x1x32xf32>
    %122 = vector.shape_cast %121 : vector<1x1x32xf32> to vector<1x32xf32>
    %123 = arith.index_cast %116 : i32 to index
    %c0_64 = arith.constant 0 : index
    %124 = vector.load %arg3[%123, %c0_64] : memref<16x32xf32, #tpu.memory_space<vmem>>, vector<1x32xf32>
    %125 = arith.select %114, %122, %124 : vector<1x32xf32>
    %126 = arith.index_cast %c6_i32 : i32 to index
    %c0_65 = arith.constant 0 : index
    %127 = vector.load %arg12[%126, %c0_65] : memref<8x32xf32, #tpu.memory_space<vmem>>, vector<1x32xf32>
    tpu.vector_store %arg12[%126, %c0_65], %125 {strides = array<i32>} : memref<8x32xf32, #tpu.memory_space<vmem>>, vector<1x32xf32>,
    %c7_i32_66 = arith.constant 7 : i32
    %128 = arith.addi %1, %c7_i32_66 : i32
    %129 = arith.index_cast %arg0 : i32 to index
    %130 = arith.index_cast %128 : i32 to index
    %131 = memref.load %arg2[%129, %130] : memref<2x8xi32, #tpu.memory_space<smem>>
    %c16_i32_67 = arith.constant 16 : i32
    %132 = arith.cmpi sge, %131, %c16_i32_67 : i32
    %c0_i32_68 = arith.constant 0 : i32
    %c15_i32_69 = arith.constant 15 : i32
    %133 = arith.maxsi %c0_i32_68, %131 : i32
    %134 = arith.minsi %c15_i32_69, %133 : i32
    %c16_i32_70 = arith.constant 16 : i32
    %135 = arith.subi %131, %c16_i32_70 : i32
    %c0_i32_71 = arith.constant 0 : i32
    %c7_i32_72 = arith.constant 7 : i32
    %136 = arith.maxsi %c0_i32_71, %135 : i32
    %137 = arith.minsi %c7_i32_72, %136 : i32
    %c0_73 = arith.constant 0 : index
    %138 = arith.index_cast %137 : i32 to index
    %c0_74 = arith.constant 0 : index
    %139 = vector.load %arg4[%c0_73, %138, %c0_74] : memref<1x8x32xf32, #tpu.memory_space<vmem>>, vector<1x1x32xf32>
    %140 = vector.shape_cast %139 : vector<1x1x32xf32> to vector<1x32xf32>
    %141 = arith.index_cast %134 : i32 to index
    %c0_75 = arith.constant 0 : index
    %142 = vector.load %arg3[%141, %c0_75] : memref<16x32xf32, #tpu.memory_space<vmem>>, vector<1x32xf32>
    %143 = arith.select %132, %140, %142 : vector<1x32xf32>
    %144 = arith.index_cast %c7_i32_66 : i32 to index
    %c0_76 = arith.constant 0 : index
    %145 = vector.load %arg12[%144, %c0_76] : memref<8x32xf32, #tpu.memory_space<vmem>>, vector<1x32xf32>
    tpu.vector_store %arg12[%144, %c0_76], %143 {strides = array<i32>} : memref<8x32xf32, #tpu.memory_space<vmem>>, vector<1x32xf32>,
    %c8_i32_77 = arith.constant 8 : i32
    %c0_78 = arith.constant 0 : index
    %c0_79 = arith.constant 0 : index
    %c0_80 = arith.constant 0 : index
    %146 = vector.load %arg5[%c0_78, %c0_79, %c0_80] : memref<1x8x1xi32, #tpu.memory_space<vmem>>, vector<1x8x1xi32>
    %147 = vector.shape_cast %146 : vector<1x8x1xi32> to vector<8x1xi32>
    %c16_i32_81 = arith.constant 16 : i32
    %148 = vector.broadcast %c16_i32_81 : i32 to vector<8x1xi32>
    %149 = arith.cmpi sge, %147, %148 : vector<8x1xi32>
    %150 = arith.extui %149 : vector<8x1xi1> to vector<8x1xi32>
    %151 = arith.sitofp %150 : vector<8x1xi32> to vector<8x1xf32>
    %c0_82 = arith.constant 0 : index
    %c0_83 = arith.constant 0 : index
    %152 = vector.load %arg7[%c0_82, %c0_83] : memref<1x32xf32, #tpu.memory_space<vmem>>, vector<1x32xf32>
    %c0_84 = arith.constant 0 : index
    %c0_85 = arith.constant 0 : index
    %153 = vector.load %arg9[%c0_84, %c0_85] : memref<1x32xf32, #tpu.memory_space<vmem>>, vector<1x32xf32>
    %154 = vector.broadcast %151 : vector<8x1xf32> to vector<8x32xf32>
    %155 = vector.broadcast %153 : vector<1x32xf32> to vector<8x32xf32>
    %156 = arith.mulf %154, %155 : vector<8x32xf32>
    %157 = vector.broadcast %152 : vector<1x32xf32> to vector<8x32xf32>
    %158 = arith.addf %157, %156 : vector<8x32xf32>
    %c0_86 = arith.constant 0 : index
    %c0_87 = arith.constant 0 : index
    %159 = vector.load %arg8[%c0_86, %c0_87] : memref<1x32xf32, #tpu.memory_space<vmem>>, vector<1x32xf32>
    %c0_88 = arith.constant 0 : index
    %c0_89 = arith.constant 0 : index
    %160 = vector.load %arg10[%c0_88, %c0_89] : memref<1x32xf32, #tpu.memory_space<vmem>>, vector<1x32xf32>
    %161 = vector.broadcast %151 : vector<8x1xf32> to vector<8x32xf32>
    %162 = vector.broadcast %160 : vector<1x32xf32> to vector<8x32xf32>
    %163 = arith.mulf %161, %162 : vector<8x32xf32>
    %164 = vector.broadcast %159 : vector<1x32xf32> to vector<8x32xf32>
    %165 = arith.addf %164, %163 : vector<8x32xf32>
    %c0_90 = arith.constant 0 : index
    %c0_91 = arith.constant 0 : index
    %166 = vector.load %arg12[%c0_90, %c0_91] : memref<8x32xf32, #tpu.memory_space<vmem>>, vector<8x32xf32>
    %cst = arith.constant dense<0.000000e+00> : vector<8xf32>
    %167 = vector.multi_reduction <add>, %166, %cst [1] : vector<8x32xf32> to vector<8xf32>
    %168 = vector.shape_cast %167 : vector<8xf32> to vector<8x1xf32>
    %cst_92 = arith.constant 3.200000e+01 : f32
    %169 = vector.broadcast %cst_92 : f32 to vector<8x1xf32>
    %170 = arith.divf %168, %169 : vector<8x1xf32>
    %171 = vector.broadcast %170 : vector<8x1xf32> to vector<8x32xf32>
    %172 = arith.subf %166, %171 : vector<8x32xf32>
    %173 = arith.mulf %172, %172 : vector<8x32xf32>
    %cst_93 = arith.constant dense<0.000000e+00> : vector<8xf32>
    %174 = vector.multi_reduction <add>, %173, %cst_93 [1] : vector<8x32xf32> to vector<8xf32>
    %175 = vector.shape_cast %174 : vector<8xf32> to vector<8x1xf32>
    %cst_94 = arith.constant 3.200000e+01 : f32
    %176 = vector.broadcast %cst_94 : f32 to vector<8x1xf32>
    %177 = arith.divf %175, %176 : vector<8x1xf32>
    %cst_95 = arith.constant 9.99999974E-6 : f32
    %178 = vector.broadcast %cst_95 : f32 to vector<8x1xf32>
    %179 = arith.addf %177, %178 : vector<8x1xf32>
    %180 = math.rsqrt %179 : vector<8x1xf32>
    %181 = vector.broadcast %180 : vector<8x1xf32> to vector<8x32xf32>
    %182 = arith.mulf %172, %181 : vector<8x32xf32>
    %183 = arith.mulf %182, %158 : vector<8x32xf32>
    %184 = arith.addf %183, %165 : vector<8x32xf32>
    %c0_96 = arith.constant 0 : index
    %c0_97 = arith.constant 0 : index
    %185 = vector.load %arg6[%c0_96, %c0_97] : memref<8x32xf32, #tpu.memory_space<vmem>>, vector<8x32xf32>
    %186 = arith.addf %184, %185 : vector<8x32xf32>
    %c0_98 = arith.constant 0 : index
    %c0_99 = arith.constant 0 : index
    %c0_100 = arith.constant 0 : index
    %187 = vector.load %arg11[%c0_98, %c0_99, %c0_100] : memref<1x8x32xf32, #tpu.memory_space<vmem>>, vector<1x8x32xf32>
    %188 = vector.shape_cast %187 : vector<1x8x32xf32> to vector<8x32xf32>
    %189 = vector.shape_cast %186 : vector<8x32xf32> to vector<1x8x32xf32>
    tpu.vector_store %arg11[%c0_98, %c0_99, %c0_100], %189 {strides = array<i32>} : memref<1x8x32xf32, #tpu.memory_space<vmem>>, vector<1x8x32xf32>,
    return
  }
  func.func @transform_0(%arg0: i32, %arg1: i32, %arg2: memref<2x8xi32, #tpu.memory_space<smem>>) -> (i32, i32) {
    %c0_i32 = arith.constant 0 : i32
    %c0_i32_0 = arith.constant 0 : i32
    %c0_i32_1 = arith.constant 0 : i32
    return %c0_i32, %c0_i32_0 : i32, i32
  }
  func.func @transform_1(%arg0: i32, %arg1: i32, %arg2: memref<2x8xi32, #tpu.memory_space<smem>>) -> (i32, i32, i32) {
    %c0_i32 = arith.constant 0 : i32
    %c0_i32_0 = arith.constant 0 : i32
    %c0_i32_1 = arith.constant 0 : i32
    return %arg0, %c0_i32, %c0_i32_0 : i32, i32, i32
  }
  func.func @transform_2(%arg0: i32, %arg1: i32, %arg2: memref<2x8xi32, #tpu.memory_space<smem>>) -> (i32, i32, i32) {
    %c0_i32 = arith.constant 0 : i32
    %c0_i32_0 = arith.constant 0 : i32
    return %arg0, %arg1, %c0_i32 : i32, i32, i32
  }
  func.func @transform_3(%arg0: i32, %arg1: i32, %arg2: memref<2x8xi32, #tpu.memory_space<smem>>) -> (i32, i32) {
    %c0_i32 = arith.constant 0 : i32
    %c0_i32_0 = arith.constant 0 : i32
    return %arg1, %c0_i32 : i32, i32
  }
  func.func @transform_4(%arg0: i32, %arg1: i32, %arg2: memref<2x8xi32, #tpu.memory_space<smem>>) -> (i32, i32) {
    %c0_i32 = arith.constant 0 : i32
    %c0_i32_0 = arith.constant 0 : i32
    %c0_i32_1 = arith.constant 0 : i32
    return %c0_i32, %c0_i32_0 : i32, i32
  }
  func.func @transform_5(%arg0: i32, %arg1: i32, %arg2: memref<2x8xi32, #tpu.memory_space<smem>>) -> (i32, i32) {
    %c0_i32 = arith.constant 0 : i32
    %c0_i32_0 = arith.constant 0 : i32
    %c0_i32_1 = arith.constant 0 : i32
    return %c0_i32, %c0_i32_0 : i32, i32
  }
  func.func @transform_6(%arg0: i32, %arg1: i32, %arg2: memref<2x8xi32, #tpu.memory_space<smem>>) -> (i32, i32) {
    %c0_i32 = arith.constant 0 : i32
    %c0_i32_0 = arith.constant 0 : i32
    %c0_i32_1 = arith.constant 0 : i32
    return %c0_i32, %c0_i32_0 : i32, i32
  }
  func.func @transform_7(%arg0: i32, %arg1: i32, %arg2: memref<2x8xi32, #tpu.memory_space<smem>>) -> (i32, i32) {
    %c0_i32 = arith.constant 0 : i32
    %c0_i32_0 = arith.constant 0 : i32
    %c0_i32_1 = arith.constant 0 : i32
    return %c0_i32, %c0_i32_0 : i32, i32
  }
  func.func @transform_8(%arg0: i32, %arg1: i32, %arg2: memref<2x8xi32, #tpu.memory_space<smem>>) -> (i32, i32, i32) {
    %c0_i32 = arith.constant 0 : i32
    %c0_i32_0 = arith.constant 0 : i32
    return %arg0, %arg1, %c0_i32 : i32, i32, i32
  }
}

</mosaic_0001>

<llo_original>
// kernel: tpu_custom_call.1
$region0: #{tpu_custom_call.1}
  #allocation0 [shape = 'u32[]', space=smem, size = 0x4, offset = 0x4, fixed_abs, tag = 'smem constant byte address 0x4 - core index']
  #allocation1 [shape = 'u32[144,128]{1,0:T(1,128)}', space=vmem, size = 0x12000, scoped, tag = 'internal scratch']
  #allocation2 [shape = 'f32[8,32]{1,0:T(8,128)}', space=vmem, size = 0x1000, scoped, tag = 'scratch operand']
  #allocation3 [shape = 's32[1]{0}', space=sflag, size = 0x4, scoped, tag = 'scoped memory for tpu_custom_call.1']
  #allocation4 [shape = 'u8[1024]{0}', space=smem, size = 0x400, scoped, tag = 'prefetched SMEM operand 0']
  %s0 = inlined_call_operand.hbm [shape: s32[2,8], index: 0, kind: input, shape index: {}]
  %s1 = inlined_call_operand.vmem [shape: f32[16,32], index: 1, kind: input, shape index: {}]
  %s2 = inlined_call_operand.hbm [shape: f32[2,8,32], index: 2, kind: input, shape index: {}]
  %s3 = inlined_call_operand.vmem [shape: s32[2,8,1], index: 3, kind: input, shape index: {}]
  %s4 = inlined_call_operand.vmem [shape: f32[8,32], index: 4, kind: input, shape index: {}]
  %s5 = inlined_call_operand.vmem [shape: f32[1,32], index: 5, kind: input, shape index: {}]
  %s6 = inlined_call_operand.vmem [shape: f32[1,32], index: 6, kind: input, shape index: {}]
  %s7 = inlined_call_operand.vmem [shape: f32[1,32], index: 7, kind: input, shape index: {}]
  %s8 = inlined_call_operand.vmem [shape: f32[1,32], index: 8, kind: input, shape index: {}]
  %s9 = inlined_call_operand.hbm [shape: f32[2,8,32], index: 9, kind: output, shape index: {}]
  %s10 = sld [smem:[#allocation0]]
  $region69: #{tpu_custom_call.1} parent=0
    _
  %s12 = ssub.s32 1, %s10
  %s13 = scalar_select 0, %s12, %s10
  %15 = dma.hbm_to_smem %s0, 32, [#allocation4], [#allocation3]
  %16 = dma.done [#allocation3], 32
  %17 = sfence
  $region1: #{tpu_custom_call.1} parent=0
    #allocation5 [shape = 'u8[8192]{0}', space=vmem, size = 0x2000, scoped, tag = 'input window, operand 2']
    #allocation6 [shape = 's32[2]{0}', space=sflag, size = 0x8, scoped, tag = 'scoped memory for tpu_custom_call.1']
    #allocation7 [shape = 's32[2]{0}', space=sflag, size = 0x8, scoped, tag = 'scoped memory for tpu_custom_call.1']
    #allocation8 [shape = 'u8[8192]{0}', space=vmem, size = 0x2000, scoped, tag = 'output window, operand 0']
    %18 = vsyncpa [#allocation6], 0
    %s19 = scalar_lea.sflag [#allocation6], 1
    %20 = vsyncpa %s19, 0
    %21 = vsyncpa [#allocation7], 0
    %s22 = scalar_lea.sflag [#allocation7], 1
    %23 = vsyncpa %s22, 0
    loop: start=0, step=1, limit=4
    $region2: #{tpu_custom_call.1} parent=1 // loop_pre_header
      _
    $region3: #{tpu_custom_call.1} parent=1 // loop_header
      %s25 = sphi 0, %s29
      %p26 = scmp.ge.s32.totalorder %s25, 4
      %s32 = sphi 0, %s44
      %s33 = sphi 0, %s40
      %s34 = sphi 0, %s32
      %s35 = sphi 0, %s33
      %s36 = sphi 0, %s34
      %s37 = sphi 0, %s35
      %s45 = sphi 0, %s45
      %s47 = sphi 0, %s45
      %s48 = sphi 0, %s47
      %s62 = sphi 0, %s48
      %s68 = sphi 0, %s70
      %s71 = sphi 0, %s68
      %s72 = sphi 0, %s71
      %s88 = sphi 0, %s72
      %s96 = sphi 0, %s98
      %s99 = sphi 0, %s96
      %s100 = sphi 0, %s99
      %s116 = sphi 0, %s100
      %s122 = sphi 0, %s124
      %s125 = sphi 0, %s122
      %s126 = sphi 0, %s125
      %s142 = sphi 0, %s126
      %s146 = sphi 0, %s146
      %s148 = sphi 0, %s146
      %s149 = sphi 0, %s148
      %s163 = sphi 0, %s149
      %s167 = sphi 0, %s167
      %s169 = sphi 0, %s167
      %s170 = sphi 0, %s169
      %s184 = sphi 0, %s170
      %s188 = sphi 0, %s188
      %s190 = sphi 0, %s188
      %s191 = sphi 0, %s190
      %s205 = sphi 0, %s191
      %s209 = sphi 0, %s209
      %s211 = sphi 0, %s209
      %s212 = sphi 0, %s211
      %s226 = sphi 0, %s212
      %s234 = sphi 0, %s236
      %s237 = sphi 0, %s234
      %s238 = sphi 0, %s237
      %s254 = sphi 0, %s238
    $region4: #{tpu_custom_call.1} parent=1 // loop_header_branch
      %28 = sbr.rel (%p26) target = $region8
    $region5: #{tpu_custom_call.1} parent=1 // loop_body
      %s30 = ssub.s32 %s25, 1
      %s31 = ssub.s32 %s25, 2
      %s38 = sadd.s32 1, %s33
      %p39 = scmp.ge.s32.totalorder %s38, 1
      %s40 = scalar_select %p39, 0, %s38
      %s41 = sadd.s32 1, %s32
      %s42 = scalar_select %p39, %s41, %s32
      %p43 = scmp.ge.s32.totalorder %s42, 2
      %s44 = scalar_select %p43, 0, %s42
      %s46 = sadd.s32 %s45, 1
      %p49 = scmp.eq.s32.totalorder %s25, 1
      %p50 = scmp.ne.s32.totalorder %s45, %s47
      %p51 = scmp.eq.s32.totalorder %s25, 0
      %p52 = por %p50, %p51
      %p53 = scmp.ne.s32.totalorder %s45, %s47
      %p54 = scmp.eq.s32.totalorder %s30, 1
      %p55 = por %p53, %p54
      %p56 = scmp.ne.s32.totalorder %s47, %s48
      %p57 = scmp.eq.s32.totalorder %s30, 0
      %p58 = por %p56, %p57
      %p59 = scmp.ne.s32.totalorder %s47, %s48
      %p60 = scmp.eq.s32.totalorder %s31, 1
      %p61 = por %p59, %p60
      %p63 = scmp.ne.s32.totalorder %s48, %s62
      %p64 = scmp.eq.s32.totalorder %s31, 0
      %p65 = por %p63, %p64
      %s66 = ssub.s32 %s32, %s44
      %p67 = scmp.eq.s32.totalorder %s66, 0
      %s69 = sadd.s32 %s68, 1
      %s70 = scalar_select %p67, %s68, %s69
      %p73 = pneg %p67
      %p74 = scmp.eq.s32.totalorder %s25, 1
      %p75 = por %p73, %p74
      %p76 = scmp.ne.s32.totalorder %s68, %s71
      %p77 = scmp.eq.s32.totalorder %s25, 0
      %p78 = por %p76, %p77
      %p79 = scmp.ne.s32.totalorder %s68, %s71
      %p80 = scmp.eq.s32.totalorder %s30, 1
      %p81 = por %p79, %p80
      %p82 = scmp.ne.s32.totalorder %s71, %s72
      %p83 = scmp.eq.s32.totalorder %s30, 0
      %p84 = por %p82, %p83
      %p85 = scmp.ne.s32.totalorder %s71, %s72
      %p86 = scmp.eq.s32.totalorder %s31, 1
      %p87 = por %p85, %p86
      %p89 = scmp.ne.s32.totalorder %s72, %s88
      %p90 = scmp.eq.s32.totalorder %s31, 0
      %p91 = por %p89, %p90
      %s92 = ssub.s32 %s32, %s44
      %s93 = ssub.s32 %s33, %s40
      %s94 = sor.u32 %s92, %s93
      %p95 = scmp.eq.s32.totalorder %s94, 0
      %s97 = sadd.s32 %s96, 1
      %s98 = scalar_select %p95, %s96, %s97
      %p101 = pneg %p95
      %p102 = scmp.eq.s32.totalorder %s25, 1
      %p103 = por %p101, %p102
      %p104 = scmp.ne.s32.totalorder %s96, %s99
      %p105 = scmp.eq.s32.totalorder %s25, 0
      %p106 = por %p104, %p105
      %p107 = scmp.ne.s32.totalorder %s96, %s99
      %p108 = scmp.eq.s32.totalorder %s30, 1
      %p109 = por %p107, %p108
      %p110 = scmp.ne.s32.totalorder %s99, %s100
      %p111 = scmp.eq.s32.totalorder %s30, 0
      %p112 = por %p110, %p111
      %p113 = scmp.ne.s32.totalorder %s99, %s100
      %p114 = scmp.eq.s32.totalorder %s31, 1
      %p115 = por %p113, %p114
      %p117 = scmp.ne.s32.totalorder %s100, %s116
      %p118 = scmp.eq.s32.totalorder %s31, 0
      %p119 = por %p117, %p118
      %s120 = ssub.s32 %s33, %s40
      %p121 = scmp.eq.s32.totalorder %s120, 0
      %s123 = sadd.s32 %s122, 1
      %s124 = scalar_select %p121, %s122, %s123
      %p127 = pneg %p121
      %p128 = scmp.eq.s32.totalorder %s25, 1
      %p129 = por %p127, %p128
      %p130 = scmp.ne.s32.totalorder %s122, %s125
      %p131 = scmp.eq.s32.totalorder %s25, 0
      %p132 = por %p130, %p131
      %p133 = scmp.ne.s32.totalorder %s122, %s125
      %p134 = scmp.eq.s32.totalorder %s30, 1
      %p135 = por %p133, %p134
      %p136 = scmp.ne.s32.totalorder %s125, %s126
      %p137 = scmp.eq.s32.totalorder %s30, 0
      %p138 = por %p136, %p137
      %p139 = scmp.ne.s32.totalorder %s125, %s126
      %p140 = scmp.eq.s32.totalorder %s31, 1
      %p141 = por %p139, %p140
      %p143 = scmp.ne.s32.totalorder %s126, %s142
      %p144 = scmp.eq.s32.totalorder %s31, 0
      %p145 = por %p143, %p144
      %s147 = sadd.s32 %s146, 1
      %p150 = scmp.eq.s32.totalorder %s25, 1
      %p151 = scmp.ne.s32.totalorder %s146, %s148
      %p152 = scmp.eq.s32.totalorder %s25, 0
      %p153 = por %p151, %p152
      %p154 = scmp.ne.s32.totalorder %s146, %s148
      %p155 = scmp.eq.s32.totalorder %s30, 1
      %p156 = por %p154, %p155
      %p157 = scmp.ne.s32.totalorder %s148, %s149
      %p158 = scmp.eq.s32.totalorder %s30, 0
      %p159 = por %p157, %p158
      %p160 = scmp.ne.s32.totalorder %s148, %s149
      %p161 = scmp.eq.s32.totalorder %s31, 1
      %p162 = por %p160, %p161
      %p164 = scmp.ne.s32.totalorder %s149, %s163
      %p165 = scmp.eq.s32.totalorder %s31, 0
      %p166 = por %p164, %p165
      %s168 = sadd.s32 %s167, 1
      %p171 = scmp.eq.s32.totalorder %s25, 1
      %p172 = scmp.ne.s32.totalorder %s167, %s169
      %p173 = scmp.eq.s32.totalorder %s25, 0
      %p174 = por %p172, %p173
      %p175 = scmp.ne.s32.totalorder %s167, %s169
      %p176 = scmp.eq.s32.totalorder %s30, 1
      %p177 = por %p175, %p176
      %p178 = scmp.ne.s32.totalorder %s169, %s170
      %p179 = scmp.eq.s32.totalorder %s30, 0
      %p180 = por %p178, %p179
      %p181 = scmp.ne.s32.totalorder %s169, %s170
      %p182 = scmp.eq.s32.totalorder %s31, 1
      %p183 = por %p181, %p182
      %p185 = scmp.ne.s32.totalorder %s170, %s184
      %p186 = scmp.eq.s32.totalorder %s31, 0
      %p187 = por %p185, %p186
      %s189 = sadd.s32 %s188, 1
      %p192 = scmp.eq.s32.totalorder %s25, 1
      %p193 = scmp.ne.s32.totalorder %s188, %s190
      %p194 = scmp.eq.s32.totalorder %s25, 0
      %p195 = por %p193, %p194
      %p196 = scmp.ne.s32.totalorder %s188, %s190
      %p197 = scmp.eq.s32.totalorder %s30, 1
      %p198 = por %p196, %p197
      %p199 = scmp.ne.s32.totalorder %s190, %s191
      %p200 = scmp.eq.s32.totalorder %s30, 0
      %p201 = por %p199, %p200
      %p202 = scmp.ne.s32.totalorder %s190, %s191
      %p203 = scmp.eq.s32.totalorder %s31, 1
      %p204 = por %p202, %p203
      %p206 = scmp.ne.s32.totalorder %s191, %s205
      %p207 = scmp.eq.s32.totalorder %s31, 0
      %p208 = por %p206, %p207
      %s210 = sadd.s32 %s209, 1
      %p213 = scmp.eq.s32.totalorder %s25, 1
      %p214 = scmp.ne.s32.totalorder %s209, %s211
      %p215 = scmp.eq.s32.totalorder %s25, 0
      %p216 = por %p214, %p215
      %p217 = scmp.ne.s32.totalorder %s209, %s211
      %p218 = scmp.eq.s32.totalorder %s30, 1
      %p219 = por %p217, %p218
      %p220 = scmp.ne.s32.totalorder %s211, %s212
      %p221 = scmp.eq.s32.totalorder %s30, 0
      %p222 = por %p220, %p221
      %p223 = scmp.ne.s32.totalorder %s211, %s212
      %p224 = scmp.eq.s32.totalorder %s31, 1
      %p225 = por %p223, %p224
      %p227 = scmp.ne.s32.totalorder %s212, %s226
      %p228 = scmp.eq.s32.totalorder %s31, 0
      %p229 = por %p227, %p228
      %s230 = ssub.s32 %s32, %s44
      %s231 = ssub.s32 %s33, %s40
      %s232 = sor.u32 %s230, %s231
      %p233 = scmp.eq.s32.totalorder %s232, 0
      %s235 = sadd.s32 %s234, 1
      %s236 = scalar_select %p233, %s234, %s235
      %p239 = pneg %p233
      %p240 = scmp.eq.s32.totalorder %s25, 1
      %p241 = por %p239, %p240
      %p242 = scmp.ne.s32.totalorder %s234, %s237
      %p243 = scmp.eq.s32.totalorder %s25, 0
      %p244 = por %p242, %p243
      %p245 = scmp.ne.s32.totalorder %s234, %s237
      %p246 = scmp.eq.s32.totalorder %s30, 1
      %p247 = por %p245, %p246
      %p248 = scmp.ne.s32.totalorder %s237, %s238
      %p249 = scmp.eq.s32.totalorder %s30, 0
      %p250 = por %p248, %p249
      %p251 = scmp.ne.s32.totalorder %s237, %s238
      %p252 = scmp.eq.s32.totalorder %s31, 1
      %p253 = por %p251, %p252
      %p255 = scmp.ne.s32.totalorder %s238, %s254
      %p256 = scmp.eq.s32.totalorder %s31, 0
      %p257 = por %p255, %p256
      %p258 = scmp.le.s32.totalorder 1, %s25
      %p259 = scmp.lt.s32.totalorder %s25, 3
      %p260 = pnand %p258, %p259
      %p261 = pneg %p260
      // Predicated region
      $region9: #{tpu_custom_call.1} parent=5 // pred_check
        _
      $region10: #{tpu_custom_call.1} parent=5 // pred_check_branch
        %263 = sbr.rel (%p260) target = $region12
      $region11: #{tpu_custom_call.1} parent=5 // pred_region
        %s264 = ssub.s32 %s25, 1
        // Predicated region
        $region13: #{tpu_custom_call.1} parent=11 // pred_check
          %p265 = pneg %p58
        $region14: #{tpu_custom_call.1} parent=11 // pred_check_branch
          %267 = sbr.rel (%p265) target = $region16
        $region15: #{tpu_custom_call.1} parent=11 // pred_region
          _
        $region16: #{tpu_custom_call.1} parent=11 // pred_fallthru
          _
        // Predicated region
        $region17: #{tpu_custom_call.1} parent=11 // pred_check
          %p268 = pneg %p138
        $region18: #{tpu_custom_call.1} parent=11 // pred_check_branch
          %270 = sbr.rel (%p268) target = $region20
        $region19: #{tpu_custom_call.1} parent=11 // pred_region
          %p271 = scmp.lt.s32.totalorder %s35, 0
          %s272 = scalar_select %p271, %s35, 0
          %s273 = smul.addr %s272, 8
          %s274 = scalar_lea.vmem %s4, %s273
        $region20: #{tpu_custom_call.1} parent=11 // pred_fallthru
          _
        // Predicated region
        $region21: #{tpu_custom_call.1} parent=11 // pred_check
          %p275 = pneg %p159
        $region22: #{tpu_custom_call.1} parent=11 // pred_check_branch
          %277 = sbr.rel (%p275) target = $region24
        $region23: #{tpu_custom_call.1} parent=11 // pred_region
          _
        $region24: #{tpu_custom_call.1} parent=11 // pred_fallthru
          _
        // Predicated region
        $region25: #{tpu_custom_call.1} parent=11 // pred_check
          %p278 = pneg %p180
        $region26: #{tpu_custom_call.1} parent=11 // pred_check_branch
          %280 = sbr.rel (%p278) target = $region28
        $region27: #{tpu_custom_call.1} parent=11 // pred_region
          _
        $region28: #{tpu_custom_call.1} parent=11 // pred_fallthru
          _
        // Predicated region
        $region29: #{tpu_custom_call.1} parent=11 // pred_check
          %p281 = pneg %p201
        $region30: #{tpu_custom_call.1} parent=11 // pred_check_branch
          %283 = sbr.rel (%p281) target = $region32
        $region31: #{tpu_custom_call.1} parent=11 // pred_region
          _
        $region32: #{tpu_custom_call.1} parent=11 // pred_fallthru
          _
        // Predicated region
        $region33: #{tpu_custom_call.1} parent=11 // pred_check
          %p284 = pneg %p222
        $region34: #{tpu_custom_call.1} parent=11 // pred_check_branch
          %286 = sbr.rel (%p284) target = $region36
        $region35: #{tpu_custom_call.1} parent=11 // pred_region
          _
        $region36: #{tpu_custom_call.1} parent=11 // pred_fallthru
          _
      $region12: #{tpu_custom_call.1} parent=5 // pred_fallthru
        _
      %p287 = scmp.lt.s32.totalorder %s25, 2
      // Predicated region
      $region37: #{tpu_custom_call.1} parent=5 // pred_check
        %p288 = pneg %p287
      $region38: #{tpu_custom_call.1} parent=5 // pred_check_branch
        %290 = sbr.rel (%p288) target = $region40
      $region39: #{tpu_custom_call.1} parent=5 // pred_region
        // Predicated region
        $region41: #{tpu_custom_call.1} parent=39 // pred_check
          %p291 = pneg %p78
        $region42: #{tpu_custom_call.1} parent=39 // pred_check_branch
          %293 = sbr.rel (%p291) target = $region44
        $region43: #{tpu_custom_call.1} parent=39 // pred_region
          %s294 = sand.u32 %s68, 1
          %s295 = scalar_lea.sflag [#allocation6], %s294
          %s296 = sand.u32 %s68, 1
          %s297 = smul.addr %s296, 8
          %s298 = scalar_lea.vmem [#allocation5], %s297
          %s300 = ssub.s32 128, 128
          %301 = vsyncadd %s295, %s300
          %s302 = smul.addr %s32, 128
          %s303 = scalar_lea.hbm %s2, %s302
          %s305 = sshll.u32 %s298, 4
          %s306 = int_to_ptr.vmem [resolvable:$true] %s305
          %308 = dma.hbm_to_vmem [thread:$0]  %s303, 128, %s306, %s295
        $region44: #{tpu_custom_call.1} parent=39 // pred_fallthru
          _
        // Predicated region
        $region45: #{tpu_custom_call.1} parent=39 // pred_check
          %p309 = pneg %p106
        $region46: #{tpu_custom_call.1} parent=39 // pred_check_branch
          %311 = sbr.rel (%p309) target = $region48
        $region47: #{tpu_custom_call.1} parent=39 // pred_region
          %p312 = scmp.lt.s32.totalorder %s32, 1
          %s313 = scalar_select %p312, %s32, 1
          %p314 = scmp.lt.s32.totalorder %s33, 0
          %s315 = scalar_select %p314, %s33, 0
          %s316 = sadd.s32 %s315, %s313
          %s317 = smul.addr %s316, 8
          %s318 = scalar_lea.vmem %s3, %s317
        $region48: #{tpu_custom_call.1} parent=39 // pred_fallthru
          _
      $region40: #{tpu_custom_call.1} parent=5 // pred_fallthru
        _
      %p319 = scmp.le.s32.totalorder 1, %s25
      %p320 = scmp.lt.s32.totalorder %s25, 3
      %p321 = pnand %p319, %p320
      %p322 = pneg %p321
      // Predicated region
      $region49: #{tpu_custom_call.1} parent=5 // pred_check
        _
      $region50: #{tpu_custom_call.1} parent=5 // pred_check_branch
        %324 = sbr.rel (%p321) target = $region52
      $region51: #{tpu_custom_call.1} parent=5 // pred_region
        %s325 = ssub.s32 %s25, 1
        %s326 = sand.u32 %s71, 1
        %s327 = scalar_lea.sflag [#allocation6], %s326
        %s328 = sand.u32 %s71, 1
        %s329 = smul.addr %s328, 8
        %s330 = scalar_lea.vmem [#allocation5], %s329
        // Predicated region
        $region53: #{tpu_custom_call.1} parent=51 // pred_check
          %p331 = pneg %p84
        $region54: #{tpu_custom_call.1} parent=51 // pred_check_branch
          %333 = sbr.rel (%p331) target = $region56
        $region55: #{tpu_custom_call.1} parent=51 // pred_region
          %334 = dma.done %s327, 128
        $region56: #{tpu_custom_call.1} parent=51 // pred_fallthru
          _
        %p335 = pneg %p58
        %p336 = pneg %p55
        %s337 = sand.u32 %s71, 1
        %s338 = scalar_lea.sflag [#allocation6], %s337
        %s339 = sand.u32 %s71, 1
        %s340 = smul.addr %s339, 8
        %s341 = scalar_lea.vmem [#allocation5], %s340
        %p342 = pneg %p84
        %p343 = pneg %p81
        %p344 = scmp.lt.s32.totalorder %s34, 1
        %s345 = scalar_select %p344, %s34, 1
        %p346 = scmp.lt.s32.totalorder %s35, 0
        %s347 = scalar_select %p346, %s35, 0
        %s348 = sadd.s32 %s347, %s345
        %s349 = smul.addr %s348, 8
        %s350 = scalar_lea.vmem %s3, %s349
        %p351 = pneg %p112
        %p352 = pneg %p109
        %p353 = scmp.lt.s32.totalorder %s35, 0
        %s354 = scalar_select %p353, %s35, 0
        %s355 = smul.addr %s354, 8
        %s356 = scalar_lea.vmem %s4, %s355
        %p357 = pneg %p138
        %p358 = pneg %p135
        %p359 = pneg %p159
        %p360 = pneg %p156
        %p361 = pneg %p180
        %p362 = pneg %p177
        %p363 = pneg %p201
        %p364 = pneg %p198
        %p365 = pneg %p222
        %p366 = pneg %p219
        %p367 = pneg %p250
        %p368 = pneg %p247
        %s369 = sand.u32 %s237, 1
        %s370 = scalar_lea.sflag [#allocation7], %s369
        %s371 = sand.u32 %s237, 1
        %s372 = smul.addr %s371, 8
        %s373 = scalar_lea.vmem [#allocation8], %s372
        %p374 = scmp.lt.s32.totalorder %s34, 1
        %s375 = scalar_select %p374, %s34, 1
        %p376 = scmp.lt.s32.totalorder %s35, 0
        %s377 = scalar_select %p376, %s35, 0
        %s378 = sadd.s32 %s377, %s375
        %s379 = smul.addr %s378, 8
        %s380 = scalar_lea.vmem %s3, %s379
        %p381 = scmp.lt.s32.totalorder %s35, 0
        %s382 = scalar_select %p381, %s35, 0
        %s383 = smul.addr %s382, 8
        %s384 = scalar_lea.vmem %s4, %s383
        %s385 = smul.u32 %s35, 8
        %s386 = sshra.s32 %s385, 7
        %s387 = sand.u32 %s385, 127
        %s388 = sadd.s32 %s386, %s34
        %s389 = smul.u32 %s388, 128
        %s390 = sshra.s32 %s385, 7
        %s391 = sand.u32 %s385, 127
        %s392 = sadd.s32 %s389, %s391
        %s393 = sld [smem:[#allocation4 + %s392]]
        %p394 = scmp.ge.s32.totalorder %s393, 16
        %p395 = scmp.gt.s32.totalorder %s393, 0
        %s396 = scalar_select %p395, %s393, 0
        %p397 = scmp.lt.s32.totalorder %s396, 15
        %s398 = scalar_select %p397, %s396, 15
        %s399 = ssub.s32 %s393, 16
        %p400 = scmp.gt.s32.totalorder %s399, 0
        %s401 = scalar_select %p400, %s399, 0
        %p402 = scmp.lt.s32.totalorder %s401, 7
        %s403 = scalar_select %p402, %s401, 7
        %s404 = scalar_lea.vmem %s330, %s403 [#allocation5]
        %v405 = vld [vmem:[%s404] sm:$0x1]
        %s406 = scalar_lea.vmem %s1, %s398
        %v407 = vld [vmem:[%s406] sm:$0x1]
        %s408 = scalar_select %p394, 1, 0
        %v409 = vstv %s408
        %vm410 = vcmp.eq.s32.totalorder %v409, 1
        %v411 = vsel %vm410, %v405, %v407
        %vm412 = vcmask 253952
        %413 = vst.msk [vmem:[#allocation2] sm:$0x1] %vm412, %v411
        %s414 = sadd.s32 %s385, 1
        %s415 = sshra.s32 %s414, 7
        %s416 = sand.u32 %s414, 127
        %s417 = sadd.s32 %s415, %s34
        %s418 = smul.u32 %s417, 128
        %s419 = sshra.s32 %s414, 7
        %s420 = sand.u32 %s414, 127
        %s421 = sadd.s32 %s418, %s420
        %s422 = sld [smem:[#allocation4 + %s421]]
        %p423 = scmp.ge.s32.totalorder %s422, 16
        %p424 = scmp.gt.s32.totalorder %s422, 0
        %s425 = scalar_select %p424, %s422, 0
        %p426 = scmp.lt.s32.totalorder %s425, 15
        %s427 = scalar_select %p426, %s425, 15
        %s428 = ssub.s32 %s422, 16
        %p429 = scmp.gt.s32.totalorder %s428, 0
        %s430 = scalar_select %p429, %s428, 0
        %p431 = scmp.lt.s32.totalorder %s430, 7
        %s432 = scalar_select %p431, %s430, 7
        %s433 = scalar_lea.vmem %s330, %s432 [#allocation5]
        %v434 = vld [vmem:[%s433] sm:$0x1]
        %s435 = scalar_lea.vmem %s1, %s427
        %v436 = vld [vmem:[%s435] sm:$0x1]
        %s437 = scalar_select %p423, 1, 0
        %v438 = vstv %s437
        %vm439 = vcmp.eq.s32.totalorder %v438, 1
        %v440 = vsel %vm439, %v434, %v436
        %441 = vst.msk [vmem:[#allocation2 + $0x1] sm:$0x1] %vm412, %v440
        %s442 = sadd.s32 %s385, 2
        %s443 = sshra.s32 %s442, 7
        %s444 = sand.u32 %s442, 127
        %s445 = sadd.s32 %s443, %s34
        %s446 = smul.u32 %s445, 128
        %s447 = sshra.s32 %s442, 7
        %s448 = sand.u32 %s442, 127
        %s449 = sadd.s32 %s446, %s448
        %s450 = sld [smem:[#allocation4 + %s449]]
        %p451 = scmp.ge.s32.totalorder %s450, 16
        %p452 = scmp.gt.s32.totalorder %s450, 0
        %s453 = scalar_select %p452, %s450, 0
        %p454 = scmp.lt.s32.totalorder %s453, 15
        %s455 = scalar_select %p454, %s453, 15
        %s456 = ssub.s32 %s450, 16
        %p457 = scmp.gt.s32.totalorder %s456, 0
        %s458 = scalar_select %p457, %s456, 0
        %p459 = scmp.lt.s32.totalorder %s458, 7
        %s460 = scalar_select %p459, %s458, 7
        %s461 = scalar_lea.vmem %s330, %s460 [#allocation5]
        %v462 = vld [vmem:[%s461] sm:$0x1]
        %s463 = scalar_lea.vmem %s1, %s455
        %v464 = vld [vmem:[%s463] sm:$0x1]
        %s465 = scalar_select %p451, 1, 0
        %v466 = vstv %s465
        %vm467 = vcmp.eq.s32.totalorder %v466, 1
        %v468 = vsel %vm467, %v462, %v464
        %469 = vst.msk [vmem:[#allocation2 + $0x2] sm:$0x1] %vm412, %v468
        %s470 = sadd.s32 %s385, 3
        %s471 = sshra.s32 %s470, 7
        %s472 = sand.u32 %s470, 127
        %s473 = sadd.s32 %s471, %s34
        %s474 = smul.u32 %s473, 128
        %s475 = sshra.s32 %s470, 7
        %s476 = sand.u32 %s470, 127
        %s477 = sadd.s32 %s474, %s476
        %s478 = sld [smem:[#allocation4 + %s477]]
        %p479 = scmp.ge.s32.totalorder %s478, 16
        %p480 = scmp.gt.s32.totalorder %s478, 0
        %s481 = scalar_select %p480, %s478, 0
        %p482 = scmp.lt.s32.totalorder %s481, 15
        %s483 = scalar_select %p482, %s481, 15
        %s484 = ssub.s32 %s478, 16
        %p485 = scmp.gt.s32.totalorder %s484, 0
        %s486 = scalar_select %p485, %s484, 0
        %p487 = scmp.lt.s32.totalorder %s486, 7
        %s488 = scalar_select %p487, %s486, 7
        %s489 = scalar_lea.vmem %s330, %s488 [#allocation5]
        %v490 = vld [vmem:[%s489] sm:$0x1]
        %s491 = scalar_lea.vmem %s1, %s483
        %v492 = vld [vmem:[%s491] sm:$0x1]
        %s493 = scalar_select %p479, 1, 0
        %v494 = vstv %s493
        %vm495 = vcmp.eq.s32.totalorder %v494, 1
        %v496 = vsel %vm495, %v490, %v492
        %497 = vst.msk [vmem:[#allocation2 + $0x3] sm:$0x1] %vm412, %v496
        %s498 = sadd.s32 %s385, 4
        %s499 = sshra.s32 %s498, 7
        %s500 = sand.u32 %s498, 127
        %s501 = sadd.s32 %s499, %s34
        %s502 = smul.u32 %s501, 128
        %s503 = sshra.s32 %s498, 7
        %s504 = sand.u32 %s498, 127
        %s505 = sadd.s32 %s502, %s504
        %s506 = sld [smem:[#allocation4 + %s505]]
        %p507 = scmp.ge.s32.totalorder %s506, 16
        %p508 = scmp.gt.s32.totalorder %s506, 0
        %s509 = scalar_select %p508, %s506, 0
        %p510 = scmp.lt.s32.totalorder %s509, 15
        %s511 = scalar_select %p510, %s509, 15
        %s512 = ssub.s32 %s506, 16
        %p513 = scmp.gt.s32.totalorder %s512, 0
        %s514 = scalar_select %p513, %s512, 0
        %p515 = scmp.lt.s32.totalorder %s514, 7
        %s516 = scalar_select %p515, %s514, 7
        %s517 = scalar_lea.vmem %s330, %s516 [#allocation5]
        %v518 = vld [vmem:[%s517] sm:$0x1]
        %s519 = scalar_lea.vmem %s1, %s511
        %v520 = vld [vmem:[%s519] sm:$0x1]
        %s521 = scalar_select %p507, 1, 0
        %v522 = vstv %s521
        %vm523 = vcmp.eq.s32.totalorder %v522, 1
        %v524 = vsel %vm523, %v518, %v520
        %525 = vst.msk [vmem:[#allocation2 + $0x4] sm:$0x1] %vm412, %v524
        %s526 = sadd.s32 %s385, 5
        %s527 = sshra.s32 %s526, 7
        %s528 = sand.u32 %s526, 127
        %s529 = sadd.s32 %s527, %s34
        %s530 = smul.u32 %s529, 128
        %s531 = sshra.s32 %s526, 7
        %s532 = sand.u32 %s526, 127
        %s533 = sadd.s32 %s530, %s532
        %s534 = sld [smem:[#allocation4 + %s533]]
        %p535 = scmp.ge.s32.totalorder %s534, 16
        %p536 = scmp.gt.s32.totalorder %s534, 0
        %s537 = scalar_select %p536, %s534, 0
        %p538 = scmp.lt.s32.totalorder %s537, 15
        %s539 = scalar_select %p538, %s537, 15
        %s540 = ssub.s32 %s534, 16
        %p541 = scmp.gt.s32.totalorder %s540, 0
        %s542 = scalar_select %p541, %s540, 0
        %p543 = scmp.lt.s32.totalorder %s542, 7
        %s544 = scalar_select %p543, %s542, 7
        %s545 = scalar_lea.vmem %s330, %s544 [#allocation5]
        %v546 = vld [vmem:[%s545] sm:$0x1]
        %s547 = scalar_lea.vmem %s1, %s539
        %v548 = vld [vmem:[%s547] sm:$0x1]
        %s549 = scalar_select %p535, 1, 0
        %v550 = vstv %s549
        %vm551 = vcmp.eq.s32.totalorder %v550, 1
        %v552 = vsel %vm551, %v546, %v548
        %553 = vst.msk [vmem:[#allocation2 + $0x5] sm:$0x1] %vm412, %v552
        %s554 = sadd.s32 %s385, 6
        %s555 = sshra.s32 %s554, 7
        %s556 = sand.u32 %s554, 127
        %s557 = sadd.s32 %s555, %s34
        %s558 = smul.u32 %s557, 128
        %s559 = sshra.s32 %s554, 7
        %s560 = sand.u32 %s554, 127
        %s561 = sadd.s32 %s558, %s560
        %s562 = sld [smem:[#allocation4 + %s561]]
        %p563 = scmp.ge.s32.totalorder %s562, 16
        %p564 = scmp.gt.s32.totalorder %s562, 0
        %s565 = scalar_select %p564, %s562, 0
        %p566 = scmp.lt.s32.totalorder %s565, 15
        %s567 = scalar_select %p566, %s565, 15
        %s568 = ssub.s32 %s562, 16
        %p569 = scmp.gt.s32.totalorder %s568, 0
        %s570 = scalar_select %p569, %s568, 0
        %p571 = scmp.lt.s32.totalorder %s570, 7
        %s572 = scalar_select %p571, %s570, 7
        %s573 = scalar_lea.vmem %s330, %s572 [#allocation5]
        %v574 = vld [vmem:[%s573] sm:$0x1]
        %s575 = scalar_lea.vmem %s1, %s567
        %v576 = vld [vmem:[%s575] sm:$0x1]
        %s577 = scalar_select %p563, 1, 0
        %v578 = vstv %s577
        %vm579 = vcmp.eq.s32.totalorder %v578, 1
        %v580 = vsel %vm579, %v574, %v576
        %581 = vst.msk [vmem:[#allocation2 + $0x6] sm:$0x1] %vm412, %v580
        %s582 = sadd.s32 %s385, 7
        %s583 = sshra.s32 %s582, 7
        %s584 = sand.u32 %s582, 127
        %s585 = sadd.s32 %s583, %s34
        %s586 = smul.u32 %s585, 128
        %s587 = sshra.s32 %s582, 7
        %s588 = sand.u32 %s582, 127
        %s589 = sadd.s32 %s586, %s588
        %s590 = sld [smem:[#allocation4 + %s589]]
        %p591 = scmp.ge.s32.totalorder %s590, 16
        %p592 = scmp.gt.s32.totalorder %s590, 0
        %s593 = scalar_select %p592, %s590, 0
        %p594 = scmp.lt.s32.totalorder %s593, 15
        %s595 = scalar_select %p594, %s593, 15
        %s596 = ssub.s32 %s590, 16
        %p597 = scmp.gt.s32.totalorder %s596, 0
        %s598 = scalar_select %p597, %s596, 0
        %p599 = scmp.lt.s32.totalorder %s598, 7
        %s600 = scalar_select %p599, %s598, 7
        %s601 = scalar_lea.vmem %s330, %s600 [#allocation5]
        %v602 = vld [vmem:[%s601] sm:$0x1]
        %s603 = scalar_lea.vmem %s1, %s595
        %v604 = vld [vmem:[%s603] sm:$0x1]
        %s605 = scalar_select %p591, 1, 0
        %v606 = vstv %s605
        %vm607 = vcmp.eq.s32.totalorder %v606, 1
        %v608 = vsel %vm607, %v602, %v604
        %609 = vst.msk [vmem:[#allocation2 + $0x7] sm:$0x1] %vm412, %v608
        %v610 = vld [vmem:[%s380] sm:$0xff]
        %vm611 = vcmp.ge.s32.totalorder %v610, 16
        %v612 = vsel %vm611, 1, 0
        %v613 = vcvt.s32.f32 %v612
        %v614 = vld [vmem:[%s5] sm:$0x1]
        %v615 = vld [vmem:[%s7] sm:$0x1]
        %617 = vset.pattern.permute.xlu0 0
        %618 = vperm.xlu0 %617, %v613
        %v619 = vpop.permute.xlu0 %618
        %v622 = vlaneseq
        %v623 = vshrl.u32 %v622, 7
        %v624 = vsub.s32 0, %v623
        %v625 = vrot.slane %v615, %v624
        %v627 = vmul.f32 %v619, %v625
        %v629 = vlaneseq
        %v630 = vshrl.u32 %v629, 7
        %v631 = vsub.s32 0, %v630
        %v632 = vrot.slane %v614, %v631
        %v634 = vadd.f32 %v632, %v627
        %v635 = vld [vmem:[%s6] sm:$0x1]
        %v636 = vld [vmem:[%s8] sm:$0x1]
        %v638 = vlaneseq
        %v639 = vshrl.u32 %v638, 7
        %v640 = vsub.s32 0, %v639
        %v641 = vrot.slane %v636, %v640
        %v643 = vmul.f32 %v619, %v641
        %v645 = vlaneseq
        %v646 = vshrl.u32 %v645, 7
        %v647 = vsub.s32 0, %v646
        %v648 = vrot.slane %v635, %v647
        %v650 = vadd.f32 %v648, %v643
        %v651 = vld [vmem:[#allocation2] sm:$0xff]
        %vm652 = vcmask 261120
        %v653 = vsel %vm652, %v651, 0.0
        %654 = vadd.xlane.f32.xlu0 %v653
        %v655 = vpop.xlane.xlu0 %654
        %v656 = vrcp.pop 32.0
        %v657 = vmul.f32 %v655, %v656
        %v658 = vsub.f32 %v651, %v657
        %v659 = vmul.f32 %v658, %v658
        %v660 = vsel %vm652, %v659, 0.0
        %661 = vadd.xlane.f32.xlu0 %v660
        %v662 = vpop.xlane.xlu0 %661
        %v663 = vmul.f32 %v662, %v656
        %v664 = vadd.f32 %v663, 1e-05
        %v665 = vrsqrt.pop %v664
        %v666 = vmul.f32 %v658, %v665
        %v667 = vmul.f32 %v666, %v634
        %v668 = vadd.f32 %v667, %v650
        %v669 = vld [vmem:[%s384] sm:$0xff]
        %v670 = vadd.f32 %v668, %v669
        %671 = vst.msk [vmem:[%s373] sm:$0xff] %vm652, %v670
        %s672 = sand.u32 %s237, 1
        %s673 = scalar_lea.sflag [#allocation7], %s672
        %s674 = sand.u32 %s237, 1
        %s675 = smul.addr %s674, 8
        %s676 = scalar_lea.vmem [#allocation8], %s675
        // Predicated region
        $region57: #{tpu_custom_call.1} parent=51 // pred_check
          %p677 = pneg %p247
        $region58: #{tpu_custom_call.1} parent=51 // pred_check_branch
          %679 = sbr.rel (%p677) target = $region60
        $region59: #{tpu_custom_call.1} parent=51 // pred_region
          %s681 = ssub.s32 128, 128
          %682 = vsyncadd %s673, %s681
          %s683 = sadd.s32 %s35, %s34
          %s684 = smul.addr %s683, 128
          %s685 = scalar_lea.hbm %s9, %s684
          %s687 = sshll.u32 %s676, 4
          %s688 = int_to_ptr.vmem [resolvable:$true] %s687
          %690 = dma.vmem_to_hbm [thread:$0]  %s688, 128, %s685, %s673
        $region60: #{tpu_custom_call.1} parent=51 // pred_fallthru
          _
      $region52: #{tpu_custom_call.1} parent=5 // pred_fallthru
        _
      %p691 = scmp.le.s32.totalorder 2, %s25
      // Predicated region
      $region61: #{tpu_custom_call.1} parent=5 // pred_check
        %p692 = pneg %p691
      $region62: #{tpu_custom_call.1} parent=5 // pred_check_branch
        %694 = sbr.rel (%p692) target = $region64
      $region63: #{tpu_custom_call.1} parent=5 // pred_region
        %s695 = ssub.s32 %s25, 2
        // Predicated region
        $region65: #{tpu_custom_call.1} parent=63 // pred_check
          %p696 = pneg %p253
        $region66: #{tpu_custom_call.1} parent=63 // pred_check_branch
          %698 = sbr.rel (%p696) target = $region68
        $region67: #{tpu_custom_call.1} parent=63 // pred_region
          %s699 = sand.u32 %s238, 1
          %s700 = scalar_lea.sflag [#allocation7], %s699
          %s701 = sand.u32 %s238, 1
          %s702 = smul.addr %s701, 8
          %s703 = scalar_lea.vmem [#allocation8], %s702
          %704 = dma.done %s700, 128
        $region68: #{tpu_custom_call.1} parent=63 // pred_fallthru
          _
      $region64: #{tpu_custom_call.1} parent=5 // pred_fallthru
        _
    $region6: #{tpu_custom_call.1} parent=1 // loop_footer
      %s29 = sadd.s32 1, %s25
    $region7: #{tpu_custom_call.1} parent=1 // loop_footer_branch
      %24 = sbr.rel target = $region3
    $region8: #{tpu_custom_call.1} parent=1 // loop_exit
      _
    %705 = vsyncpa [#allocation6], 1
    %s706 = scalar_lea.sflag [#allocation6], 1
    %707 = vsyncpa %s706, 1
    %708 = vsyncpa [#allocation7], 1
    %s709 = scalar_lea.sflag [#allocation7], 1
    %710 = vsyncpa %s709, 1

</llo_original>
